<compile_context>
chip_gen: v7x
topology: tpu7x:2x2x1
jax: 0.10.0
libtpu: 0.0.40
codegen_flags: <defaults>
</compile_context>

<pallas_src>
import jax
import jax.numpy as jnp
from jax.experimental import pallas as pl
from jax.experimental.pallas import tpu as pltpu


def make_kernel(B, T, Bp):
    """Build the LSTM classifier kernel for static (B, T, Bp)."""

    def kernel(ids_ref, table_ref, whh_ref, wfc_ref, bfc_ref, out_ref):
        # ids_ref:   SMEM (B*T,) int32, row-major flatten of (B, T)
        # table_ref: VMEM (V, 1, 4H)  fused rows emb[v]@W_ih + b (g cols x2)
        # whh_ref:   VMEM (H, 4H)     recurrent weights (g cols x2)
        # wfc_ref:   VMEM (H, Cp)     bfc_ref: (1, Cp)   out_ref: (Bp, Cp)
        H = whh_ref.shape[0]
        G = whh_ref.shape[1]          # 4H

        w_hh = whh_ref[...]
        h = jnp.zeros((Bp, H), jnp.float32)
        c = jnp.zeros((Bp, H), jnp.float32)
        pad_rows = None
        if Bp > B:
            # Padded batch rows get gx = 0 -> they stay exactly zero forever.
            pad_rows = jnp.zeros((Bp - B, G), jnp.float32)

        # Unrolled recurrence: only the in-kernel gather + h@W_hh per step.
        for t in range(T):
            pieces = [table_ref[ids_ref[b * T + t]] for b in range(B)]  # (1, 4H) each
            if pad_rows is not None:
                pieces.append(pad_rows)
            gx_t = pieces[0] if len(pieces) == 1 else jnp.concatenate(pieces, axis=0)

            gates = gx_t + jnp.dot(h, w_hh, preferred_element_type=jnp.float32)
            s = jax.nn.sigmoid(gates)            # one EUP pass over (Bp, 4H)
            i_g = s[:, 0 * H:1 * H]
            f_g = s[:, 1 * H:2 * H]
            g_g = 2.0 * s[:, 2 * H:3 * H] - 1.0  # tanh(g): g cols pre-scaled by 2
            o_g = s[:, 3 * H:4 * H]
            c = f_g * c + i_g * g_g
            h = o_g * jnp.tanh(c)

        # Dropout is identity at inference; final Linear on h_T.
        out_ref[...] = (jnp.dot(h, wfc_ref[...], preferred_element_type=jnp.float32)
                        + bfc_ref[...])

    return kernel


def prepare_inference_params(params):
    """Precompute the fused (V,1,4H) table and fold the g-gate scale (once per
    weight update); pad the FC head to the lane width."""
    emb = params["embedding"].astype(jnp.float32)       # (V, E)
    w_ih = params["w_ih"].astype(jnp.float32)            # (E, 4H)
    w_hh = params["w_hh"].astype(jnp.float32)            # (H, 4H)
    b = params["b"].astype(jnp.float32)                  # (1, 4H)
    w_fc = params["w_fc"].astype(jnp.float32)            # (H, C)
    b_fc = params["b_fc"].astype(jnp.float32)            # (1, C)

    V = emb.shape[0]
    H = w_hh.shape[0]
    C = w_fc.shape[1]
    Cp = max(128, -(-C // 128) * 128)

    # tanh(z) = 2*sigmoid(2z) - 1  -> scale the g-gate columns by 2 in the
    # weights instead of per step in the kernel.
    gate_scale = jnp.concatenate([
        jnp.ones((2 * H,), jnp.float32),
        jnp.full((H,), 2.0, jnp.float32),
        jnp.ones((H,), jnp.float32),
    ])[None, :]                                           # (1, 4H)

    table = (emb @ w_ih + b) * gate_scale                 # (V, 4H)
    table = table.reshape(V, 1, 4 * H)                    # (V, 1, 4H)
    w_hh_s = w_hh * gate_scale                            # (H, 4H)
    w_fc_p = jnp.pad(w_fc, ((0, 0), (0, Cp - C)))         # (H, Cp)
    b_fc_p = jnp.pad(b_fc, ((0, 0), (0, Cp - C)))         # (1, Cp)

    return dict(table=table, w_hh=w_hh_s, w_fc=w_fc_p, b_fc=b_fc_p, num_classes=C)


def intent_classifier_forward(x_ids, prep):
    """x_ids: (B, T) int32 token ids. Returns logits (B, C) float32."""
    B, T = x_ids.shape
    C = prep["num_classes"]
    Cp = prep["w_fc"].shape[1]
    Bp = max(8, -(-B // 8) * 8)

    ids_flat = x_ids.reshape(-1).astype(jnp.int32)        # (B*T,), b-major

    out = pl.pallas_call(
        make_kernel(B, T, Bp),
        out_shape=jax.ShapeDtypeStruct((Bp, Cp), jnp.float32),
        in_specs=[
            pl.BlockSpec(memory_space=pltpu.MemorySpace.SMEM),   # token ids
            pl.BlockSpec(memory_space=pltpu.MemorySpace.VMEM),   # fused table
            pl.BlockSpec(memory_space=pltpu.MemorySpace.VMEM),   # W_hh
            pl.BlockSpec(memory_space=pltpu.MemorySpace.VMEM),   # W_fc
            pl.BlockSpec(memory_space=pltpu.MemorySpace.VMEM),   # b_fc
        ],
        out_specs=pl.BlockSpec(memory_space=pltpu.MemorySpace.VMEM),
    )(ids_flat, prep["table"], prep["w_hh"], prep["w_fc"], prep["b_fc"])

    return out[:B, :C]


def make_params(key, input_size, hidden_size, embedding_dim, num_classes):
    ks = jax.random.split(key, 7)
    scale = 0.1
    emb = scale * jax.random.normal(ks[0], (input_size, embedding_dim), jnp.float32)
    # PyTorch LSTM stores weight_ih (4H, E) / weight_hh (4H, H); we keep the transpose.
    w_ih = scale * jax.random.normal(ks[1], (embedding_dim, 4 * hidden_size), jnp.float32)
    w_hh = scale * jax.random.normal(ks[2], (hidden_size, 4 * hidden_size), jnp.float32)
    # b = bias_ih + bias_hh (always summed).
    b = (scale * jax.random.normal(ks[3], (1, 4 * hidden_size), jnp.float32)
         + scale * jax.random.normal(ks[4], (1, 4 * hidden_size), jnp.float32))
    w_fc = scale * jax.random.normal(ks[5], (hidden_size, num_classes), jnp.float32)
    b_fc = scale * jax.random.normal(ks[6], (1, num_classes), jnp.float32)
    return dict(embedding=emb, w_ih=w_ih, w_hh=w_hh, b=b, w_fc=w_fc, b_fc=b_fc)


def reference_forward(x_ids, params):
    """Pure-JAX reference replicating PyTorch eval-mode semantics."""
    emb = jnp.take(params["embedding"], x_ids, axis=0)      # (B, T, E)
    B, T, E = emb.shape
    H = params["w_hh"].shape[0]
    h = jnp.zeros((B, H), jnp.float32)
    c = jnp.zeros((B, H), jnp.float32)

    def step(carry, x_t):
        h, c = carry
        gates = x_t @ params["w_ih"] + h @ params["w_hh"] + params["b"]
        i = jax.nn.sigmoid(gates[:, 0 * H:1 * H])
        f = jax.nn.sigmoid(gates[:, 1 * H:2 * H])
        g = jnp.tanh(gates[:, 2 * H:3 * H])
        o = jax.nn.sigmoid(gates[:, 3 * H:4 * H])
        c = f * c + i * g
        h = o * jnp.tanh(c)
        return (h, c), None

    (h, _), _ = jax.lax.scan(step, (h, c), jnp.transpose(emb, (1, 0, 2)))
    return h @ params["w_fc"] + params["b_fc"]


if __name__ == "__main__":
    # Small shapes: vocab=20, embedding_dim=32, hidden_size=32, num_classes=8
    B, T = 2, 8
    input_size, hidden_size, embedding_dim, num_classes = 20, 32, 32, 8

    key = jax.random.PRNGKey(0)
    k_params, k_x = jax.random.split(key)
    params = make_params(k_params, input_size, hidden_size, embedding_dim, num_classes)
    prep = prepare_inference_params(params)   # once per weight update
    x_ids = jax.random.randint(k_x, (B, T), 0, input_size, dtype=jnp.int32)

    out = jax.block_until_ready(intent_classifier_forward(x_ids, prep))
    ref = jax.block_until_ready(reference_forward(x_ids, params))

    assert out.shape == (B, num_classes)
    assert jnp.allclose(out, ref, rtol=1e-4, atol=1e-4), "mismatch vs reference"

    print("KERNEL_OK")
</pallas_src>

<mosaic_0001>
module attributes {stable_mosaic.version = 11 : i64} {
  func.func @kernel(%arg0: memref<16xi32, #tpu.memory_space<smem>>, %arg1: memref<20x1x128xf32, #tpu.memory_space<vmem>>, %arg2: memref<32x128xf32, #tpu.memory_space<vmem>>, %arg3: memref<32x128xf32, #tpu.memory_space<vmem>>, %arg4: memref<1x128xf32, #tpu.memory_space<vmem>>, %arg5: memref<8x128xf32, #tpu.memory_space<vmem>>) attributes {dimension_semantics = [], scalar_prefetch = 0 : i64, scratch_operands = 0 : i64, tpu.core_type = #tpu.core_type<tc>} {
    %c0 = arith.constant 0 : index
    %c0_0 = arith.constant 0 : index
    %0 = vector.load %arg2[%c0, %c0_0] : memref<32x128xf32, #tpu.memory_space<vmem>>, vector<32x128xf32>
    %cst = arith.constant 0.000000e+00 : f32
    %1 = vector.broadcast %cst : f32 to vector<8x32xf32>
    %cst_1 = arith.constant 0.000000e+00 : f32
    %2 = vector.broadcast %cst_1 : f32 to vector<8x32xf32>
    %cst_2 = arith.constant 0.000000e+00 : f32
    %3 = vector.broadcast %cst_2 : f32 to vector<6x128xf32>
    %c0_3 = arith.constant 0 : index
    %4 = memref.load %arg0[%c0_3] : memref<16xi32, #tpu.memory_space<smem>>
    %5 = arith.index_cast %4 : i32 to index
    %c0_4 = arith.constant 0 : index
    %c0_5 = arith.constant 0 : index
    %6 = vector.load %arg1[%5, %c0_4, %c0_5] : memref<20x1x128xf32, #tpu.memory_space<vmem>>, vector<1x1x128xf32>
    %7 = vector.shape_cast %6 : vector<1x1x128xf32> to vector<1x128xf32>
    %c8 = arith.constant 8 : index
    %8 = memref.load %arg0[%c8] : memref<16xi32, #tpu.memory_space<smem>>
    %9 = arith.index_cast %8 : i32 to index
    %c0_6 = arith.constant 0 : index
    %c0_7 = arith.constant 0 : index
    %10 = vector.load %arg1[%9, %c0_6, %c0_7] : memref<20x1x128xf32, #tpu.memory_space<vmem>>, vector<1x1x128xf32>
    %11 = vector.shape_cast %10 : vector<1x1x128xf32> to vector<1x128xf32>
    %12 = tpu.concatenate %7, %11, %3 in 0 : vector<1x128xf32>, vector<1x128xf32>, vector<6x128xf32> -> vector<8x128xf32>
    %cst_8 = arith.constant dense<0.000000e+00> : vector<8x128xf32>
    %13 = tpu.matmul %1, %0, %cst_8 {dimension_numbers = #tpu.dot_dimension_numbers<[1], [0], [0], [1], [0, 0, 1, 1], [], []>} : vector<8x32xf32>, vector<32x128xf32>, vector<8x128xf32> -> vector<8x128xf32>
    %14 = arith.addf %12, %13 : vector<8x128xf32>
    %15 = arith.negf %14 : vector<8x128xf32>
    %16 = math.exp %15 : vector<8x128xf32>
    %cst_9 = arith.constant 1.000000e+00 : f32
    %17 = vector.broadcast %cst_9 : f32 to vector<8x128xf32>
    %18 = arith.addf %17, %16 : vector<8x128xf32>
    %19 = arith.divf %17, %18 : vector<8x128xf32>
    %20 = vector.extract_strided_slice %19 {offsets = [0, 0], sizes = [8, 32], strides = [1, 1]} : vector<8x128xf32> to vector<8x32xf32>
    %21 = vector.extract_strided_slice %19 {offsets = [0, 32], sizes = [8, 32], strides = [1, 1]} : vector<8x128xf32> to vector<8x32xf32>
    %22 = vector.extract_strided_slice %19 {offsets = [0, 64], sizes = [8, 32], strides = [1, 1]} : vector<8x128xf32> to vector<8x32xf32>
    %cst_10 = arith.constant 2.000000e+00 : f32
    %23 = vector.broadcast %cst_10 : f32 to vector<8x32xf32>
    %24 = arith.mulf %23, %22 : vector<8x32xf32>
    %cst_11 = arith.constant 1.000000e+00 : f32
    %25 = vector.broadcast %cst_11 : f32 to vector<8x32xf32>
    %26 = arith.subf %24, %25 : vector<8x32xf32>
    %27 = vector.extract_strided_slice %19 {offsets = [0, 96], sizes = [8, 32], strides = [1, 1]} : vector<8x128xf32> to vector<8x32xf32>
    %28 = arith.mulf %21, %2 : vector<8x32xf32>
    %29 = arith.mulf %20, %26 : vector<8x32xf32>
    %30 = arith.addf %28, %29 : vector<8x32xf32>
    %31 = math.tanh %30 : vector<8x32xf32>
    %32 = arith.mulf %27, %31 : vector<8x32xf32>
    %c1 = arith.constant 1 : index
    %33 = memref.load %arg0[%c1] : memref<16xi32, #tpu.memory_space<smem>>
    %34 = arith.index_cast %33 : i32 to index
    %c0_12 = arith.constant 0 : index
    %c0_13 = arith.constant 0 : index
    %35 = vector.load %arg1[%34, %c0_12, %c0_13] : memref<20x1x128xf32, #tpu.memory_space<vmem>>, vector<1x1x128xf32>
    %36 = vector.shape_cast %35 : vector<1x1x128xf32> to vector<1x128xf32>
    %c9 = arith.constant 9 : index
    %37 = memref.load %arg0[%c9] : memref<16xi32, #tpu.memory_space<smem>>
    %38 = arith.index_cast %37 : i32 to index
    %c0_14 = arith.constant 0 : index
    %c0_15 = arith.constant 0 : index
    %39 = vector.load %arg1[%38, %c0_14, %c0_15] : memref<20x1x128xf32, #tpu.memory_space<vmem>>, vector<1x1x128xf32>
    %40 = vector.shape_cast %39 : vector<1x1x128xf32> to vector<1x128xf32>
    %41 = tpu.concatenate %36, %40, %3 in 0 : vector<1x128xf32>, vector<1x128xf32>, vector<6x128xf32> -> vector<8x128xf32>
    %cst_16 = arith.constant dense<0.000000e+00> : vector<8x128xf32>
    %42 = tpu.matmul %32, %0, %cst_16 {dimension_numbers = #tpu.dot_dimension_numbers<[1], [0], [0], [1], [0, 0, 1, 1], [], []>} : vector<8x32xf32>, vector<32x128xf32>, vector<8x128xf32> -> vector<8x128xf32>
    %43 = arith.addf %41, %42 : vector<8x128xf32>
    %44 = arith.negf %43 : vector<8x128xf32>
    %45 = math.exp %44 : vector<8x128xf32>
    %cst_17 = arith.constant 1.000000e+00 : f32
    %46 = vector.broadcast %cst_17 : f32 to vector<8x128xf32>
    %47 = arith.addf %46, %45 : vector<8x128xf32>
    %48 = arith.divf %46, %47 : vector<8x128xf32>
    %49 = vector.extract_strided_slice %48 {offsets = [0, 0], sizes = [8, 32], strides = [1, 1]} : vector<8x128xf32> to vector<8x32xf32>
    %50 = vector.extract_strided_slice %48 {offsets = [0, 32], sizes = [8, 32], strides = [1, 1]} : vector<8x128xf32> to vector<8x32xf32>
    %51 = vector.extract_strided_slice %48 {offsets = [0, 64], sizes = [8, 32], strides = [1, 1]} : vector<8x128xf32> to vector<8x32xf32>
    %cst_18 = arith.constant 2.000000e+00 : f32
    %52 = vector.broadcast %cst_18 : f32 to vector<8x32xf32>
    %53 = arith.mulf %52, %51 : vector<8x32xf32>
    %cst_19 = arith.constant 1.000000e+00 : f32
    %54 = vector.broadcast %cst_19 : f32 to vector<8x32xf32>
    %55 = arith.subf %53, %54 : vector<8x32xf32>
    %56 = vector.extract_strided_slice %48 {offsets = [0, 96], sizes = [8, 32], strides = [1, 1]} : vector<8x128xf32> to vector<8x32xf32>
    %57 = arith.mulf %50, %30 : vector<8x32xf32>
    %58 = arith.mulf %49, %55 : vector<8x32xf32>
    %59 = arith.addf %57, %58 : vector<8x32xf32>
    %60 = math.tanh %59 : vector<8x32xf32>
    %61 = arith.mulf %56, %60 : vector<8x32xf32>
    %c2 = arith.constant 2 : index
    %62 = memref.load %arg0[%c2] : memref<16xi32, #tpu.memory_space<smem>>
    %63 = arith.index_cast %62 : i32 to index
    %c0_20 = arith.constant 0 : index
    %c0_21 = arith.constant 0 : index
    %64 = vector.load %arg1[%63, %c0_20, %c0_21] : memref<20x1x128xf32, #tpu.memory_space<vmem>>, vector<1x1x128xf32>
    %65 = vector.shape_cast %64 : vector<1x1x128xf32> to vector<1x128xf32>
    %c10 = arith.constant 10 : index
    %66 = memref.load %arg0[%c10] : memref<16xi32, #tpu.memory_space<smem>>
    %67 = arith.index_cast %66 : i32 to index
    %c0_22 = arith.constant 0 : index
    %c0_23 = arith.constant 0 : index
    %68 = vector.load %arg1[%67, %c0_22, %c0_23] : memref<20x1x128xf32, #tpu.memory_space<vmem>>, vector<1x1x128xf32>
    %69 = vector.shape_cast %68 : vector<1x1x128xf32> to vector<1x128xf32>
    %70 = tpu.concatenate %65, %69, %3 in 0 : vector<1x128xf32>, vector<1x128xf32>, vector<6x128xf32> -> vector<8x128xf32>
    %cst_24 = arith.constant dense<0.000000e+00> : vector<8x128xf32>
    %71 = tpu.matmul %61, %0, %cst_24 {dimension_numbers = #tpu.dot_dimension_numbers<[1], [0], [0], [1], [0, 0, 1, 1], [], []>} : vector<8x32xf32>, vector<32x128xf32>, vector<8x128xf32> -> vector<8x128xf32>
    %72 = arith.addf %70, %71 : vector<8x128xf32>
    %73 = arith.negf %72 : vector<8x128xf32>
    %74 = math.exp %73 : vector<8x128xf32>
    %cst_25 = arith.constant 1.000000e+00 : f32
    %75 = vector.broadcast %cst_25 : f32 to vector<8x128xf32>
    %76 = arith.addf %75, %74 : vector<8x128xf32>
    %77 = arith.divf %75, %76 : vector<8x128xf32>
    %78 = vector.extract_strided_slice %77 {offsets = [0, 0], sizes = [8, 32], strides = [1, 1]} : vector<8x128xf32> to vector<8x32xf32>
    %79 = vector.extract_strided_slice %77 {offsets = [0, 32], sizes = [8, 32], strides = [1, 1]} : vector<8x128xf32> to vector<8x32xf32>
    %80 = vector.extract_strided_slice %77 {offsets = [0, 64], sizes = [8, 32], strides = [1, 1]} : vector<8x128xf32> to vector<8x32xf32>
    %cst_26 = arith.constant 2.000000e+00 : f32
    %81 = vector.broadcast %cst_26 : f32 to vector<8x32xf32>
    %82 = arith.mulf %81, %80 : vector<8x32xf32>
    %cst_27 = arith.constant 1.000000e+00 : f32
    %83 = vector.broadcast %cst_27 : f32 to vector<8x32xf32>
    %84 = arith.subf %82, %83 : vector<8x32xf32>
    %85 = vector.extract_strided_slice %77 {offsets = [0, 96], sizes = [8, 32], strides = [1, 1]} : vector<8x128xf32> to vector<8x32xf32>
    %86 = arith.mulf %79, %59 : vector<8x32xf32>
    %87 = arith.mulf %78, %84 : vector<8x32xf32>
    %88 = arith.addf %86, %87 : vector<8x32xf32>
    %89 = math.tanh %88 : vector<8x32xf32>
    %90 = arith.mulf %85, %89 : vector<8x32xf32>
    %c3 = arith.constant 3 : index
    %91 = memref.load %arg0[%c3] : memref<16xi32, #tpu.memory_space<smem>>
    %92 = arith.index_cast %91 : i32 to index
    %c0_28 = arith.constant 0 : index
    %c0_29 = arith.constant 0 : index
    %93 = vector.load %arg1[%92, %c0_28, %c0_29] : memref<20x1x128xf32, #tpu.memory_space<vmem>>, vector<1x1x128xf32>
    %94 = vector.shape_cast %93 : vector<1x1x128xf32> to vector<1x128xf32>
    %c11 = arith.constant 11 : index
    %95 = memref.load %arg0[%c11] : memref<16xi32, #tpu.memory_space<smem>>
    %96 = arith.index_cast %95 : i32 to index
    %c0_30 = arith.constant 0 : index
    %c0_31 = arith.constant 0 : index
    %97 = vector.load %arg1[%96, %c0_30, %c0_31] : memref<20x1x128xf32, #tpu.memory_space<vmem>>, vector<1x1x128xf32>
    %98 = vector.shape_cast %97 : vector<1x1x128xf32> to vector<1x128xf32>
    %99 = tpu.concatenate %94, %98, %3 in 0 : vector<1x128xf32>, vector<1x128xf32>, vector<6x128xf32> -> vector<8x128xf32>
    %cst_32 = arith.constant dense<0.000000e+00> : vector<8x128xf32>
    %100 = tpu.matmul %90, %0, %cst_32 {dimension_numbers = #tpu.dot_dimension_numbers<[1], [0], [0], [1], [0, 0, 1, 1], [], []>} : vector<8x32xf32>, vector<32x128xf32>, vector<8x128xf32> -> vector<8x128xf32>
    %101 = arith.addf %99, %100 : vector<8x128xf32>
    %102 = arith.negf %101 : vector<8x128xf32>
    %103 = math.exp %102 : vector<8x128xf32>
    %cst_33 = arith.constant 1.000000e+00 : f32
    %104 = vector.broadcast %cst_33 : f32 to vector<8x128xf32>
    %105 = arith.addf %104, %103 : vector<8x128xf32>
    %106 = arith.divf %104, %105 : vector<8x128xf32>
    %107 = vector.extract_strided_slice %106 {offsets = [0, 0], sizes = [8, 32], strides = [1, 1]} : vector<8x128xf32> to vector<8x32xf32>
    %108 = vector.extract_strided_slice %106 {offsets = [0, 32], sizes = [8, 32], strides = [1, 1]} : vector<8x128xf32> to vector<8x32xf32>
    %109 = vector.extract_strided_slice %106 {offsets = [0, 64], sizes = [8, 32], strides = [1, 1]} : vector<8x128xf32> to vector<8x32xf32>
    %cst_34 = arith.constant 2.000000e+00 : f32
    %110 = vector.broadcast %cst_34 : f32 to vector<8x32xf32>
    %111 = arith.mulf %110, %109 : vector<8x32xf32>
    %cst_35 = arith.constant 1.000000e+00 : f32
    %112 = vector.broadcast %cst_35 : f32 to vector<8x32xf32>
    %113 = arith.subf %111, %112 : vector<8x32xf32>
    %114 = vector.extract_strided_slice %106 {offsets = [0, 96], sizes = [8, 32], strides = [1, 1]} : vector<8x128xf32> to vector<8x32xf32>
    %115 = arith.mulf %108, %88 : vector<8x32xf32>
    %116 = arith.mulf %107, %113 : vector<8x32xf32>
    %117 = arith.addf %115, %116 : vector<8x32xf32>
    %118 = math.tanh %117 : vector<8x32xf32>
    %119 = arith.mulf %114, %118 : vector<8x32xf32>
    %c4 = arith.constant 4 : index
    %120 = memref.load %arg0[%c4] : memref<16xi32, #tpu.memory_space<smem>>
    %121 = arith.index_cast %120 : i32 to index
    %c0_36 = arith.constant 0 : index
    %c0_37 = arith.constant 0 : index
    %122 = vector.load %arg1[%121, %c0_36, %c0_37] : memref<20x1x128xf32, #tpu.memory_space<vmem>>, vector<1x1x128xf32>
    %123 = vector.shape_cast %122 : vector<1x1x128xf32> to vector<1x128xf32>
    %c12 = arith.constant 12 : index
    %124 = memref.load %arg0[%c12] : memref<16xi32, #tpu.memory_space<smem>>
    %125 = arith.index_cast %124 : i32 to index
    %c0_38 = arith.constant 0 : index
    %c0_39 = arith.constant 0 : index
    %126 = vector.load %arg1[%125, %c0_38, %c0_39] : memref<20x1x128xf32, #tpu.memory_space<vmem>>, vector<1x1x128xf32>
    %127 = vector.shape_cast %126 : vector<1x1x128xf32> to vector<1x128xf32>
    %128 = tpu.concatenate %123, %127, %3 in 0 : vector<1x128xf32>, vector<1x128xf32>, vector<6x128xf32> -> vector<8x128xf32>
    %cst_40 = arith.constant dense<0.000000e+00> : vector<8x128xf32>
    %129 = tpu.matmul %119, %0, %cst_40 {dimension_numbers = #tpu.dot_dimension_numbers<[1], [0], [0], [1], [0, 0, 1, 1], [], []>} : vector<8x32xf32>, vector<32x128xf32>, vector<8x128xf32> -> vector<8x128xf32>
    %130 = arith.addf %128, %129 : vector<8x128xf32>
    %131 = arith.negf %130 : vector<8x128xf32>
    %132 = math.exp %131 : vector<8x128xf32>
    %cst_41 = arith.constant 1.000000e+00 : f32
    %133 = vector.broadcast %cst_41 : f32 to vector<8x128xf32>
    %134 = arith.addf %133, %132 : vector<8x128xf32>
    %135 = arith.divf %133, %134 : vector<8x128xf32>
    %136 = vector.extract_strided_slice %135 {offsets = [0, 0], sizes = [8, 32], strides = [1, 1]} : vector<8x128xf32> to vector<8x32xf32>
    %137 = vector.extract_strided_slice %135 {offsets = [0, 32], sizes = [8, 32], strides = [1, 1]} : vector<8x128xf32> to vector<8x32xf32>
    %138 = vector.extract_strided_slice %135 {offsets = [0, 64], sizes = [8, 32], strides = [1, 1]} : vector<8x128xf32> to vector<8x32xf32>
    %cst_42 = arith.constant 2.000000e+00 : f32
    %139 = vector.broadcast %cst_42 : f32 to vector<8x32xf32>
    %140 = arith.mulf %139, %138 : vector<8x32xf32>
    %cst_43 = arith.constant 1.000000e+00 : f32
    %141 = vector.broadcast %cst_43 : f32 to vector<8x32xf32>
    %142 = arith.subf %140, %141 : vector<8x32xf32>
    %143 = vector.extract_strided_slice %135 {offsets = [0, 96], sizes = [8, 32], strides = [1, 1]} : vector<8x128xf32> to vector<8x32xf32>
    %144 = arith.mulf %137, %117 : vector<8x32xf32>
    %145 = arith.mulf %136, %142 : vector<8x32xf32>
    %146 = arith.addf %144, %145 : vector<8x32xf32>
    %147 = math.tanh %146 : vector<8x32xf32>
    %148 = arith.mulf %143, %147 : vector<8x32xf32>
    %c5 = arith.constant 5 : index
    %149 = memref.load %arg0[%c5] : memref<16xi32, #tpu.memory_space<smem>>
    %150 = arith.index_cast %149 : i32 to index
    %c0_44 = arith.constant 0 : index
    %c0_45 = arith.constant 0 : index
    %151 = vector.load %arg1[%150, %c0_44, %c0_45] : memref<20x1x128xf32, #tpu.memory_space<vmem>>, vector<1x1x128xf32>
    %152 = vector.shape_cast %151 : vector<1x1x128xf32> to vector<1x128xf32>
    %c13 = arith.constant 13 : index
    %153 = memref.load %arg0[%c13] : memref<16xi32, #tpu.memory_space<smem>>
    %154 = arith.index_cast %153 : i32 to index
    %c0_46 = arith.constant 0 : index
    %c0_47 = arith.constant 0 : index
    %155 = vector.load %arg1[%154, %c0_46, %c0_47] : memref<20x1x128xf32, #tpu.memory_space<vmem>>, vector<1x1x128xf32>
    %156 = vector.shape_cast %155 : vector<1x1x128xf32> to vector<1x128xf32>
    %157 = tpu.concatenate %152, %156, %3 in 0 : vector<1x128xf32>, vector<1x128xf32>, vector<6x128xf32> -> vector<8x128xf32>
    %cst_48 = arith.constant dense<0.000000e+00> : vector<8x128xf32>
    %158 = tpu.matmul %148, %0, %cst_48 {dimension_numbers = #tpu.dot_dimension_numbers<[1], [0], [0], [1], [0, 0, 1, 1], [], []>} : vector<8x32xf32>, vector<32x128xf32>, vector<8x128xf32> -> vector<8x128xf32>
    %159 = arith.addf %157, %158 : vector<8x128xf32>
    %160 = arith.negf %159 : vector<8x128xf32>
    %161 = math.exp %160 : vector<8x128xf32>
    %cst_49 = arith.constant 1.000000e+00 : f32
    %162 = vector.broadcast %cst_49 : f32 to vector<8x128xf32>
    %163 = arith.addf %162, %161 : vector<8x128xf32>
    %164 = arith.divf %162, %163 : vector<8x128xf32>
    %165 = vector.extract_strided_slice %164 {offsets = [0, 0], sizes = [8, 32], strides = [1, 1]} : vector<8x128xf32> to vector<8x32xf32>
    %166 = vector.extract_strided_slice %164 {offsets = [0, 32], sizes = [8, 32], strides = [1, 1]} : vector<8x128xf32> to vector<8x32xf32>
    %167 = vector.extract_strided_slice %164 {offsets = [0, 64], sizes = [8, 32], strides = [1, 1]} : vector<8x128xf32> to vector<8x32xf32>
    %cst_50 = arith.constant 2.000000e+00 : f32
    %168 = vector.broadcast %cst_50 : f32 to vector<8x32xf32>
    %169 = arith.mulf %168, %167 : vector<8x32xf32>
    %cst_51 = arith.constant 1.000000e+00 : f32
    %170 = vector.broadcast %cst_51 : f32 to vector<8x32xf32>
    %171 = arith.subf %169, %170 : vector<8x32xf32>
    %172 = vector.extract_strided_slice %164 {offsets = [0, 96], sizes = [8, 32], strides = [1, 1]} : vector<8x128xf32> to vector<8x32xf32>
    %173 = arith.mulf %166, %146 : vector<8x32xf32>
    %174 = arith.mulf %165, %171 : vector<8x32xf32>
    %175 = arith.addf %173, %174 : vector<8x32xf32>
    %176 = math.tanh %175 : vector<8x32xf32>
    %177 = arith.mulf %172, %176 : vector<8x32xf32>
    %c6 = arith.constant 6 : index
    %178 = memref.load %arg0[%c6] : memref<16xi32, #tpu.memory_space<smem>>
    %179 = arith.index_cast %178 : i32 to index
    %c0_52 = arith.constant 0 : index
    %c0_53 = arith.constant 0 : index
    %180 = vector.load %arg1[%179, %c0_52, %c0_53] : memref<20x1x128xf32, #tpu.memory_space<vmem>>, vector<1x1x128xf32>
    %181 = vector.shape_cast %180 : vector<1x1x128xf32> to vector<1x128xf32>
    %c14 = arith.constant 14 : index
    %182 = memref.load %arg0[%c14] : memref<16xi32, #tpu.memory_space<smem>>
    %183 = arith.index_cast %182 : i32 to index
    %c0_54 = arith.constant 0 : index
    %c0_55 = arith.constant 0 : index
    %184 = vector.load %arg1[%183, %c0_54, %c0_55] : memref<20x1x128xf32, #tpu.memory_space<vmem>>, vector<1x1x128xf32>
    %185 = vector.shape_cast %184 : vector<1x1x128xf32> to vector<1x128xf32>
    %186 = tpu.concatenate %181, %185, %3 in 0 : vector<1x128xf32>, vector<1x128xf32>, vector<6x128xf32> -> vector<8x128xf32>
    %cst_56 = arith.constant dense<0.000000e+00> : vector<8x128xf32>
    %187 = tpu.matmul %177, %0, %cst_56 {dimension_numbers = #tpu.dot_dimension_numbers<[1], [0], [0], [1], [0, 0, 1, 1], [], []>} : vector<8x32xf32>, vector<32x128xf32>, vector<8x128xf32> -> vector<8x128xf32>
    %188 = arith.addf %186, %187 : vector<8x128xf32>
    %189 = arith.negf %188 : vector<8x128xf32>
    %190 = math.exp %189 : vector<8x128xf32>
    %cst_57 = arith.constant 1.000000e+00 : f32
    %191 = vector.broadcast %cst_57 : f32 to vector<8x128xf32>
    %192 = arith.addf %191, %190 : vector<8x128xf32>
    %193 = arith.divf %191, %192 : vector<8x128xf32>
    %194 = vector.extract_strided_slice %193 {offsets = [0, 0], sizes = [8, 32], strides = [1, 1]} : vector<8x128xf32> to vector<8x32xf32>
    %195 = vector.extract_strided_slice %193 {offsets = [0, 32], sizes = [8, 32], strides = [1, 1]} : vector<8x128xf32> to vector<8x32xf32>
    %196 = vector.extract_strided_slice %193 {offsets = [0, 64], sizes = [8, 32], strides = [1, 1]} : vector<8x128xf32> to vector<8x32xf32>
    %cst_58 = arith.constant 2.000000e+00 : f32
    %197 = vector.broadcast %cst_58 : f32 to vector<8x32xf32>
    %198 = arith.mulf %197, %196 : vector<8x32xf32>
    %cst_59 = arith.constant 1.000000e+00 : f32
    %199 = vector.broadcast %cst_59 : f32 to vector<8x32xf32>
    %200 = arith.subf %198, %199 : vector<8x32xf32>
    %201 = vector.extract_strided_slice %193 {offsets = [0, 96], sizes = [8, 32], strides = [1, 1]} : vector<8x128xf32> to vector<8x32xf32>
    %202 = arith.mulf %195, %175 : vector<8x32xf32>
    %203 = arith.mulf %194, %200 : vector<8x32xf32>
    %204 = arith.addf %202, %203 : vector<8x32xf32>
    %205 = math.tanh %204 : vector<8x32xf32>
    %206 = arith.mulf %201, %205 : vector<8x32xf32>
    %c7 = arith.constant 7 : index
    %207 = memref.load %arg0[%c7] : memref<16xi32, #tpu.memory_space<smem>>
    %208 = arith.index_cast %207 : i32 to index
    %c0_60 = arith.constant 0 : index
    %c0_61 = arith.constant 0 : index
    %209 = vector.load %arg1[%208, %c0_60, %c0_61] : memref<20x1x128xf32, #tpu.memory_space<vmem>>, vector<1x1x128xf32>
    %210 = vector.shape_cast %209 : vector<1x1x128xf32> to vector<1x128xf32>
    %c15 = arith.constant 15 : index
    %211 = memref.load %arg0[%c15] : memref<16xi32, #tpu.memory_space<smem>>
    %212 = arith.index_cast %211 : i32 to index
    %c0_62 = arith.constant 0 : index
    %c0_63 = arith.constant 0 : index
    %213 = vector.load %arg1[%212, %c0_62, %c0_63] : memref<20x1x128xf32, #tpu.memory_space<vmem>>, vector<1x1x128xf32>
    %214 = vector.shape_cast %213 : vector<1x1x128xf32> to vector<1x128xf32>
    %215 = tpu.concatenate %210, %214, %3 in 0 : vector<1x128xf32>, vector<1x128xf32>, vector<6x128xf32> -> vector<8x128xf32>
    %cst_64 = arith.constant dense<0.000000e+00> : vector<8x128xf32>
    %216 = tpu.matmul %206, %0, %cst_64 {dimension_numbers = #tpu.dot_dimension_numbers<[1], [0], [0], [1], [0, 0, 1, 1], [], []>} : vector<8x32xf32>, vector<32x128xf32>, vector<8x128xf32> -> vector<8x128xf32>
    %217 = arith.addf %215, %216 : vector<8x128xf32>
    %218 = arith.negf %217 : vector<8x128xf32>
    %219 = math.exp %218 : vector<8x128xf32>
    %cst_65 = arith.constant 1.000000e+00 : f32
    %220 = vector.broadcast %cst_65 : f32 to vector<8x128xf32>
    %221 = arith.addf %220, %219 : vector<8x128xf32>
    %222 = arith.divf %220, %221 : vector<8x128xf32>
    %223 = vector.extract_strided_slice %222 {offsets = [0, 0], sizes = [8, 32], strides = [1, 1]} : vector<8x128xf32> to vector<8x32xf32>
    %224 = vector.extract_strided_slice %222 {offsets = [0, 32], sizes = [8, 32], strides = [1, 1]} : vector<8x128xf32> to vector<8x32xf32>
    %225 = vector.extract_strided_slice %222 {offsets = [0, 64], sizes = [8, 32], strides = [1, 1]} : vector<8x128xf32> to vector<8x32xf32>
    %cst_66 = arith.constant 2.000000e+00 : f32
    %226 = vector.broadcast %cst_66 : f32 to vector<8x32xf32>
    %227 = arith.mulf %226, %225 : vector<8x32xf32>
    %cst_67 = arith.constant 1.000000e+00 : f32
    %228 = vector.broadcast %cst_67 : f32 to vector<8x32xf32>
    %229 = arith.subf %227, %228 : vector<8x32xf32>
    %230 = vector.extract_strided_slice %222 {offsets = [0, 96], sizes = [8, 32], strides = [1, 1]} : vector<8x128xf32> to vector<8x32xf32>
    %231 = arith.mulf %224, %204 : vector<8x32xf32>
    %232 = arith.mulf %223, %229 : vector<8x32xf32>
    %233 = arith.addf %231, %232 : vector<8x32xf32>
    %234 = math.tanh %233 : vector<8x32xf32>
    %235 = arith.mulf %230, %234 : vector<8x32xf32>
    %c0_68 = arith.constant 0 : index
    %c0_69 = arith.constant 0 : index
    %236 = vector.load %arg3[%c0_68, %c0_69] : memref<32x128xf32, #tpu.memory_space<vmem>>, vector<32x128xf32>
    %cst_70 = arith.constant dense<0.000000e+00> : vector<8x128xf32>
    %237 = tpu.matmul %235, %236, %cst_70 {dimension_numbers = #tpu.dot_dimension_numbers<[1], [0], [0], [1], [0, 0, 1, 1], [], []>} : vector<8x32xf32>, vector<32x128xf32>, vector<8x128xf32> -> vector<8x128xf32>
    %c0_71 = arith.constant 0 : index
    %c0_72 = arith.constant 0 : index
    %238 = vector.load %arg4[%c0_71, %c0_72] : memref<1x128xf32, #tpu.memory_space<vmem>>, vector<1x128xf32>
    %239 = vector.broadcast %238 : vector<1x128xf32> to vector<8x128xf32>
    %240 = arith.addf %237, %239 : vector<8x128xf32>
    %c0_73 = arith.constant 0 : index
    %c0_74 = arith.constant 0 : index
    %241 = vector.load %arg5[%c0_73, %c0_74] : memref<8x128xf32, #tpu.memory_space<vmem>>, vector<8x128xf32>
    tpu.vector_store %arg5[%c0_73, %c0_74], %240 {strides = array<i32>} : memref<8x128xf32, #tpu.memory_space<vmem>>, vector<8x128xf32>,
    return
  }
}

</mosaic_0001>

<llo_original>
// kernel: tpu_custom_call.1
$region0: #{tpu_custom_call.1}
  #allocation0 [shape = 'u32[]', space=smem, size = 0x4, offset = 0x4, fixed_abs, tag = 'smem constant byte address 0x4 - core index']
  #allocation1 [shape = 'u32[144,128]{1,0:T(1,128)}', space=vmem, size = 0x12000, scoped, tag = 'internal scratch']
  %s0 = inlined_call_operand.hbm [shape: s32[16], index: 0, kind: input, shape index: {}]
  %s1 = inlined_call_operand.hbm [shape: f32[20,1,128], index: 1, kind: input, shape index: {}]
  %s2 = inlined_call_operand.hbm [shape: f32[32,128], index: 2, kind: input, shape index: {}]
  %s3 = inlined_call_operand.hbm [shape: f32[32,128], index: 3, kind: input, shape index: {}]
  %s4 = inlined_call_operand.vmem [shape: f32[1,128], index: 4, kind: input, shape index: {}]
  %s5 = inlined_call_operand.hbm [shape: f32[8,128], index: 5, kind: output, shape index: {}]
  %s6 = sld [smem:[#allocation0]]
  $region46: #{tpu_custom_call.1} parent=0
    _
  %s8 = ssub.s32 1, %s6
  %s9 = scalar_select 0, %s8, %s6
  $region1: #{tpu_custom_call.1} parent=0
    #allocation2 [shape = 'u8[512]{0}', space=smem, size = 0x200, scoped, tag = 'input window, operand 0, single buffered']
    #allocation3 [shape = 's32[1]{0}', space=sflag, size = 0x4, scoped, tag = 'scoped memory for tpu_custom_call.1']
    #allocation4 [shape = 's32[1]{0}', space=sflag, size = 0x4, scoped, tag = 'scoped memory for tpu_custom_call.1']
    #allocation5 [shape = 's32[1]{0}', space=sflag, size = 0x4, scoped, tag = 'scoped memory for tpu_custom_call.1']
    #allocation6 [shape = 'u8[10240]{0}', space=vmem, size = 0x2800, scoped, tag = 'input window, operand 1, single buffered']
    #allocation7 [shape = 'u8[16384]{0}', space=vmem, size = 0x4000, scoped, tag = 'input window, operand 2, single buffered']
    #allocation8 [shape = 's32[1]{0}', space=sflag, size = 0x4, scoped, tag = 'scoped memory for tpu_custom_call.1']
    #allocation9 [shape = 'u8[16384]{0}', space=vmem, size = 0x4000, scoped, tag = 'input window, operand 3, single buffered']
    #allocation10 [shape = 'u8[4096]{0}', space=vmem, size = 0x1000, scoped, tag = 'output window, operand 0, single buffered']
    %10 = vsyncpa [#allocation5], 0
    %11 = vsyncpa [#allocation3], 0
    %12 = vsyncpa [#allocation8], 0
    %13 = vsyncpa [#allocation4], 0
    // Predicated region
    $region2: #{tpu_custom_call.1} parent=1 // pred_check
      _
    $region3: #{tpu_custom_call.1} parent=1 // pred_check_branch
      %15 = sbr.rel (0) target = $region5
    $region4: #{tpu_custom_call.1} parent=1 // pred_region
      %s17 = ssub.s32 16, 16
      %18 = vsyncadd [#allocation5], %s17
      %21 = dma.hbm_to_smem %s0, 16, [#allocation2], [#allocation5]
    $region5: #{tpu_custom_call.1} parent=1 // pred_fallthru
      _
    // Predicated region
    $region6: #{tpu_custom_call.1} parent=1 // pred_check
      _
    $region7: #{tpu_custom_call.1} parent=1 // pred_check_branch
      %23 = sbr.rel (0) target = $region9
    $region8: #{tpu_custom_call.1} parent=1 // pred_region
      %s25 = ssub.s32 320, 320
      %26 = vsyncadd [#allocation3], %s25
      %s27 = sshll.u32 [#allocation6], 4
      %s28 = int_to_ptr.vmem [resolvable:$true] %s27
      %33 = dma.hbm_to_vmem [thread:$0]  %s1, 320, %s28, [#allocation3], 16, 16, 1
    $region9: #{tpu_custom_call.1} parent=1 // pred_fallthru
      _
    // Predicated region
    $region10: #{tpu_custom_call.1} parent=1 // pred_check
      _
    $region11: #{tpu_custom_call.1} parent=1 // pred_check_branch
      %35 = sbr.rel (0) target = $region13
    $region12: #{tpu_custom_call.1} parent=1 // pred_region
      %s37 = ssub.s32 512, 512
      %38 = vsyncadd [#allocation8], %s37
      %s39 = sshll.u32 [#allocation7], 4
      %s40 = int_to_ptr.vmem [resolvable:$true] %s39
      %45 = dma.hbm_to_vmem [thread:$0]  %s2, 512, %s40, [#allocation8], 128, 128, 8
    $region13: #{tpu_custom_call.1} parent=1 // pred_fallthru
      _
    // Predicated region
    $region14: #{tpu_custom_call.1} parent=1 // pred_check
      _
    $region15: #{tpu_custom_call.1} parent=1 // pred_check_branch
      %47 = sbr.rel (0) target = $region17
    $region16: #{tpu_custom_call.1} parent=1 // pred_region
      %s49 = ssub.s32 512, 512
      %50 = vsyncadd [#allocation8], %s49
      %s51 = sshll.u32 [#allocation9], 4
      %s52 = int_to_ptr.vmem [resolvable:$true] %s51
      %57 = dma.hbm_to_vmem [thread:$0]  %s3, 512, %s52, [#allocation8], 128, 128, 8
    $region17: #{tpu_custom_call.1} parent=1 // pred_fallthru
      _
    // Predicated region
    $region18: #{tpu_custom_call.1} parent=1 // pred_check
      _
    $region19: #{tpu_custom_call.1} parent=1 // pred_check_branch
      %59 = sbr.rel (0) target = $region21
    $region20: #{tpu_custom_call.1} parent=1 // pred_region
      _
    $region21: #{tpu_custom_call.1} parent=1 // pred_fallthru
      _
    // Predicated region
    $region22: #{tpu_custom_call.1} parent=1 // pred_check
      _
    $region23: #{tpu_custom_call.1} parent=1 // pred_check_branch
      %61 = sbr.rel (0) target = $region25
    $region24: #{tpu_custom_call.1} parent=1 // pred_region
      %62 = dma.done [#allocation5], 16
    $region25: #{tpu_custom_call.1} parent=1 // pred_fallthru
      _
    // Predicated region
    $region26: #{tpu_custom_call.1} parent=1 // pred_check
      _
    $region27: #{tpu_custom_call.1} parent=1 // pred_check_branch
      %64 = sbr.rel (0) target = $region29
    $region28: #{tpu_custom_call.1} parent=1 // pred_region
      %65 = dma.done [#allocation3], 320
    $region29: #{tpu_custom_call.1} parent=1 // pred_fallthru
      _
    // Predicated region
    $region30: #{tpu_custom_call.1} parent=1 // pred_check
      _
    $region31: #{tpu_custom_call.1} parent=1 // pred_check_branch
      %67 = sbr.rel (0) target = $region33
    $region32: #{tpu_custom_call.1} parent=1 // pred_region
      %68 = dma.done [#allocation8], 512
    $region33: #{tpu_custom_call.1} parent=1 // pred_fallthru
      _
    // Predicated region
    $region34: #{tpu_custom_call.1} parent=1 // pred_check
      _
    $region35: #{tpu_custom_call.1} parent=1 // pred_check_branch
      %70 = sbr.rel (0) target = $region37
    $region36: #{tpu_custom_call.1} parent=1 // pred_region
      %71 = dma.done [#allocation8], 512
    $region37: #{tpu_custom_call.1} parent=1 // pred_fallthru
      _
    %72 = sfence
    %v73 = vld [vmem:[#allocation7] sm:$0xff]
    %v74 = vld [vmem:[#allocation7 + $0x8] sm:$0xff]
    %v75 = vld [vmem:[#allocation7 + $0x10] sm:$0xff]
    %v76 = vld [vmem:[#allocation7 + $0x18] sm:$0xff]
    %s77 = sld [smem:[#allocation2]]
    %s78 = scalar_lea.vmem [#allocation6], %s77
    %v79 = vld [vmem:[%s78] sm:$0x1]
    %s80 = sld [smem:[#allocation2 + $0x8]]
    %s81 = scalar_lea.vmem [#allocation6], %s80
    %v82 = vld [vmem:[%s81] sm:$0x1]
    %v84 = vlaneseq
    %v85 = vshrl.u32 %v84, 7
    %v86 = vsub.s32 0, %v85
    %v87 = vrot.slane %v82, %v86
    %vm89 = vcmask 1040384
    %v90 = vsel %vm89, %v79, %v87
    %vm91 = vcmask 1041408
    %v92 = vsel %vm91, %v90, 0.0
    %vm93 = vcmask 261120
    %v95 = vsel %vm93, 0.0, 0
    %97 = vmatprep.subr.mxu0 0.0
    %98 = vmatpush1.msra.mxu0 %v73
    %99 = vmatprep.subr.mxu0 0.0
    %100 = vmatpush1.msra.mxu0 %v74
    %101 = vmatprep.subr.mxu0 0.0
    %102 = vmatpush1.msra.mxu0 %v75
    %103 = vmatprep.subr.mxu0 0.0
    %104 = vmatpush1.msra.mxu0 %v76
    %105 = vmatprep.subr.mxu0 0.0
    %106 = vmatpush1.msra.mxu0 0.0
    %107 = vmatprep.subr.mxu0 0.0
    %108 = vmatpush1.msra.mxu0 0.0
    %109 = vmatprep.subr.mxu0 0.0
    %110 = vmatpush1.msra.mxu0 0.0
    %111 = vmatprep.subr.mxu0 0.0
    %112 = vmatpush1.msra.mxu0 0.0
    %113 = vmatprep.subr.mxu0 0.0
    %114 = vmatpush1.msra.mxu0 0.0
    %115 = vmatprep.subr.mxu0 0.0
    %116 = vmatpush1.msra.mxu0 0.0
    %117 = vmatprep.subr.mxu0 0.0
    %118 = vmatpush1.msra.mxu0 0.0
    %119 = vmatprep.subr.mxu0 0.0
    %120 = vmatpush1.msra.mxu0 0.0
    %121 = vmatprep.subr.mxu0 0.0
    %122 = vmatpush1.msra.mxu0 0.0
    %123 = vmatprep.subr.mxu0 0.0
    %124 = vmatpush1.msra.mxu0 0.0
    %125 = vmatprep.subr.mxu0 0.0
    %126 = vmatpush1.msra.mxu0 0.0
    %127 = vmatprep.subr.mxu0 0.0
    %128 = vmatpush1.msra.mxu0 0.0
    %129 = vmatprep.subr.mxu0 0.0
    %130 = vmatpush1.msra.mxu0 0.0
    %131 = vmatprep.subr.mxu0 0.0
    %132 = vmatpush1.msra.mxu0 0.0
    %133 = vmatprep.subr.mxu0 0.0
    %134 = vmatpush1.msra.mxu0 0.0
    %135 = vmatprep.subr.mxu0 0.0
    %136 = vmatpush1.msra.mxu0 0.0
    %137 = vmatprep.subr.mxu0 0.0
    %138 = vmatpush1.msra.mxu0 0.0
    %139 = vmatprep.subr.mxu0 0.0
    %140 = vmatpush1.msra.mxu0 0.0
    %141 = vmatprep.subr.mxu0 0.0
    %142 = vmatpush1.msra.mxu0 0.0
    %143 = vmatprep.subr.mxu0 0.0
    %144 = vmatpush1.msra.mxu0 0.0
    %145 = vmatprep.subr.mxu0 0.0
    %146 = vmatpush1.msra.mxu0 0.0
    %147 = vmatprep.subr.mxu0 0.0
    %148 = vmatpush1.msra.mxu0 0.0
    %149 = vmatprep.subr.mxu0 0.0
    %150 = vmatpush1.msra.mxu0 0.0
    %151 = vmatprep.subr.mxu0 0.0
    %152 = vmatpush1.msra.mxu0 0.0
    %153 = vmatprep.subr.mxu0 0.0
    %154 = vmatpush1.msra.mxu0 0.0
    %155 = vmatprep.subr.mxu0 0.0
    %156 = vmatpush1.msra.mxu0 0.0
    %157 = vmatprep.subr.mxu0 0.0
    %158 = vmatpush1.msra.mxu0 0.0
    %159 = vmatprep.subr.mxu0 0.0
    %160 = vmatpush1.msra.mxu0 0.0
    %161 = vmatprep.mubr.f32.mxu0 0.0
    %162 = vmatmul.mubr.f32.gmra.mrb[0].mxu0 %v95
    %v163 = vpop.f32.mrb[0].mxu0
    %v164 = vadd.f32 0.0, %v163
    %v165 = vpop.f32.mrb[0].mxu0
    %166 = vdwg.mxu0
    %v167 = vadd.f32 %v92, %v164
    %v168 = vxor.u32 %v167, 2147483648
    %v169 = vmul.f32 %v168, 1.442695
    %v170 = vpow.pop %v169
    %v171 = vadd.f32 %v170, 1.0
    %v172 = vrcp.pop %v171
    %v173 = vmul.f32 1.0, %v172
    %v174 = vmul.f32 %v173, 2.0
    %v175 = vsub.f32 %v174, 1.0
    %v176 = vmul.f32 %v173, 0.0
    %178 = vrot.lane.b32.xlu0 %v175, 64
    %v179 = vpop.permute.xlu0 %178
    %v181 = vmul.f32 %v173, %v179
    %183 = vrot.lane.b32.xlu0 %v181, 32
    %v184 = vpop.permute.xlu0 %183
    %v186 = vadd.f32 %v176, %v184
    %v187 = vtanh.pop %v186
    %189 = vrot.lane.b32.xlu0 %v187, 64
    %v190 = vpop.permute.xlu0 %189
    %v192 = vmul.f32 %v173, %v190
    %s193 = sld [smem:[#allocation2 + $0x1]]
    %s194 = scalar_lea.vmem [#allocation6], %s193
    %v195 = vld [vmem:[%s194] sm:$0x1]
    %s196 = sld [smem:[#allocation2 + $0x9]]
    %s197 = scalar_lea.vmem [#allocation6], %s196
    %v198 = vld [vmem:[%s197] sm:$0x1]
    %v200 = vlaneseq
    %v201 = vshrl.u32 %v200, 7
    %v202 = vsub.s32 0, %v201
    %v203 = vrot.slane %v198, %v202
    %v205 = vsel %vm89, %v195, %v203
    %v206 = vsel %vm91, %v205, 0.0
    %208 = vrot.lane.b32.xlu0 %v192, 32
    %v209 = vpop.permute.xlu0 %208
    %v210 = vsel %vm93, %v209, 0
    %212 = vmatprep.subr.mxu0 0.0
    %213 = vmatpush1.msra.mxu0 %v73
    %214 = vmatprep.subr.mxu0 0.0
    %215 = vmatpush1.msra.mxu0 %v74
    %216 = vmatprep.subr.mxu0 0.0
    %217 = vmatpush1.msra.mxu0 %v75
    %218 = vmatprep.subr.mxu0 0.0
    %219 = vmatpush1.msra.mxu0 %v76
    %220 = vmatprep.subr.mxu0 0.0
    %221 = vmatpush1.msra.mxu0 0.0
    %222 = vmatprep.subr.mxu0 0.0
    %223 = vmatpush1.msra.mxu0 0.0
    %224 = vmatprep.subr.mxu0 0.0
    %225 = vmatpush1.msra.mxu0 0.0
    %226 = vmatprep.subr.mxu0 0.0
    %227 = vmatpush1.msra.mxu0 0.0
    %228 = vmatprep.subr.mxu0 0.0
    %229 = vmatpush1.msra.mxu0 0.0
    %230 = vmatprep.subr.mxu0 0.0
    %231 = vmatpush1.msra.mxu0 0.0
    %232 = vmatprep.subr.mxu0 0.0
    %233 = vmatpush1.msra.mxu0 0.0
    %234 = vmatprep.subr.mxu0 0.0
    %235 = vmatpush1.msra.mxu0 0.0
    %236 = vmatprep.subr.mxu0 0.0
    %237 = vmatpush1.msra.mxu0 0.0
    %238 = vmatprep.subr.mxu0 0.0
    %239 = vmatpush1.msra.mxu0 0.0
    %240 = vmatprep.subr.mxu0 0.0
    %241 = vmatpush1.msra.mxu0 0.0
    %242 = vmatprep.subr.mxu0 0.0
    %243 = vmatpush1.msra.mxu0 0.0
    %244 = vmatprep.subr.mxu0 0.0
    %245 = vmatpush1.msra.mxu0 0.0
    %246 = vmatprep.subr.mxu0 0.0
    %247 = vmatpush1.msra.mxu0 0.0
    %248 = vmatprep.subr.mxu0 0.0
    %249 = vmatpush1.msra.mxu0 0.0
    %250 = vmatprep.subr.mxu0 0.0
    %251 = vmatpush1.msra.mxu0 0.0
    %252 = vmatprep.subr.mxu0 0.0
    %253 = vmatpush1.msra.mxu0 0.0
    %254 = vmatprep.subr.mxu0 0.0
    %255 = vmatpush1.msra.mxu0 0.0
    %256 = vmatprep.subr.mxu0 0.0
    %257 = vmatpush1.msra.mxu0 0.0
    %258 = vmatprep.subr.mxu0 0.0
    %259 = vmatpush1.msra.mxu0 0.0
    %260 = vmatprep.subr.mxu0 0.0
    %261 = vmatpush1.msra.mxu0 0.0
    %262 = vmatprep.subr.mxu0 0.0
    %263 = vmatpush1.msra.mxu0 0.0
    %264 = vmatprep.subr.mxu0 0.0
    %265 = vmatpush1.msra.mxu0 0.0
    %266 = vmatprep.subr.mxu0 0.0
    %267 = vmatpush1.msra.mxu0 0.0
    %268 = vmatprep.subr.mxu0 0.0
    %269 = vmatpush1.msra.mxu0 0.0
    %270 = vmatprep.subr.mxu0 0.0
    %271 = vmatpush1.msra.mxu0 0.0
    %272 = vmatprep.subr.mxu0 0.0
    %273 = vmatpush1.msra.mxu0 0.0
    %274 = vmatprep.subr.mxu0 0.0
    %275 = vmatpush1.msra.mxu0 0.0
    %276 = vmatprep.mubr.f32.mxu0 0.0
    %277 = vmatmul.mubr.f32.gmra.mrb[0].mxu0 %v210
    %v278 = vpop.f32.mrb[0].mxu0
    %v279 = vadd.f32 0.0, %v278
    %v280 = vpop.f32.mrb[0].mxu0
    %281 = vdwg.mxu0
    %v282 = vadd.f32 %v206, %v279
    %v283 = vxor.u32 %v282, 2147483648
    %v284 = vmul.f32 %v283, 1.442695
    %v285 = vpow.pop %v284
    %v286 = vadd.f32 %v285, 1.0
    %v287 = vrcp.pop %v286
    %v288 = vmul.f32 1.0, %v287
    %v289 = vmul.f32 %v288, 2.0
    %v290 = vsub.f32 %v289, 1.0
    %v291 = vmul.f32 %v288, %v186
    %293 = vrot.lane.b32.xlu0 %v290, 64
    %v294 = vpop.permute.xlu0 %293
    %v296 = vmul.f32 %v288, %v294
    %298 = vrot.lane.b32.xlu0 %v296, 32
    %v299 = vpop.permute.xlu0 %298
    %v301 = vadd.f32 %v291, %v299
    %v302 = vtanh.pop %v301
    %304 = vrot.lane.b32.xlu0 %v302, 64
    %v305 = vpop.permute.xlu0 %304
    %v307 = vmul.f32 %v288, %v305
    %s308 = sld [smem:[#allocation2 + $0x2]]
    %s309 = scalar_lea.vmem [#allocation6], %s308
    %v310 = vld [vmem:[%s309] sm:$0x1]
    %s311 = sld [smem:[#allocation2 + $0xa]]
    %s312 = scalar_lea.vmem [#allocation6], %s311
    %v313 = vld [vmem:[%s312] sm:$0x1]
    %v315 = vlaneseq
    %v316 = vshrl.u32 %v315, 7
    %v317 = vsub.s32 0, %v316
    %v318 = vrot.slane %v313, %v317
    %v320 = vsel %vm89, %v310, %v318
    %v321 = vsel %vm91, %v320, 0.0
    %323 = vrot.lane.b32.xlu0 %v307, 32
    %v324 = vpop.permute.xlu0 %323
    %v325 = vsel %vm93, %v324, 0
    %327 = vmatprep.subr.mxu0 0.0
    %328 = vmatpush1.msra.mxu0 %v73
    %329 = vmatprep.subr.mxu0 0.0
    %330 = vmatpush1.msra.mxu0 %v74
    %331 = vmatprep.subr.mxu0 0.0
    %332 = vmatpush1.msra.mxu0 %v75
    %333 = vmatprep.subr.mxu0 0.0
    %334 = vmatpush1.msra.mxu0 %v76
    %335 = vmatprep.subr.mxu0 0.0
    %336 = vmatpush1.msra.mxu0 0.0
    %337 = vmatprep.subr.mxu0 0.0
    %338 = vmatpush1.msra.mxu0 0.0
    %339 = vmatprep.subr.mxu0 0.0
    %340 = vmatpush1.msra.mxu0 0.0
    %341 = vmatprep.subr.mxu0 0.0
    %342 = vmatpush1.msra.mxu0 0.0
    %343 = vmatprep.subr.mxu0 0.0
    %344 = vmatpush1.msra.mxu0 0.0
    %345 = vmatprep.subr.mxu0 0.0
    %346 = vmatpush1.msra.mxu0 0.0
    %347 = vmatprep.subr.mxu0 0.0
    %348 = vmatpush1.msra.mxu0 0.0
    %349 = vmatprep.subr.mxu0 0.0
    %350 = vmatpush1.msra.mxu0 0.0
    %351 = vmatprep.subr.mxu0 0.0
    %352 = vmatpush1.msra.mxu0 0.0
    %353 = vmatprep.subr.mxu0 0.0
    %354 = vmatpush1.msra.mxu0 0.0
    %355 = vmatprep.subr.mxu0 0.0
    %356 = vmatpush1.msra.mxu0 0.0
    %357 = vmatprep.subr.mxu0 0.0
    %358 = vmatpush1.msra.mxu0 0.0
    %359 = vmatprep.subr.mxu0 0.0
    %360 = vmatpush1.msra.mxu0 0.0
    %361 = vmatprep.subr.mxu0 0.0
    %362 = vmatpush1.msra.mxu0 0.0
    %363 = vmatprep.subr.mxu0 0.0
    %364 = vmatpush1.msra.mxu0 0.0
    %365 = vmatprep.subr.mxu0 0.0
    %366 = vmatpush1.msra.mxu0 0.0
    %367 = vmatprep.subr.mxu0 0.0
    %368 = vmatpush1.msra.mxu0 0.0
    %369 = vmatprep.subr.mxu0 0.0
    %370 = vmatpush1.msra.mxu0 0.0
    %371 = vmatprep.subr.mxu0 0.0
    %372 = vmatpush1.msra.mxu0 0.0
    %373 = vmatprep.subr.mxu0 0.0
    %374 = vmatpush1.msra.mxu0 0.0
    %375 = vmatprep.subr.mxu0 0.0
    %376 = vmatpush1.msra.mxu0 0.0
    %377 = vmatprep.subr.mxu0 0.0
    %378 = vmatpush1.msra.mxu0 0.0
    %379 = vmatprep.subr.mxu0 0.0
    %380 = vmatpush1.msra.mxu0 0.0
    %381 = vmatprep.subr.mxu0 0.0
    %382 = vmatpush1.msra.mxu0 0.0
    %383 = vmatprep.subr.mxu0 0.0
    %384 = vmatpush1.msra.mxu0 0.0
    %385 = vmatprep.subr.mxu0 0.0
    %386 = vmatpush1.msra.mxu0 0.0
    %387 = vmatprep.subr.mxu0 0.0
    %388 = vmatpush1.msra.mxu0 0.0
    %389 = vmatprep.subr.mxu0 0.0
    %390 = vmatpush1.msra.mxu0 0.0
    %391 = vmatprep.mubr.f32.mxu0 0.0
    %392 = vmatmul.mubr.f32.gmra.mrb[0].mxu0 %v325
    %v393 = vpop.f32.mrb[0].mxu0
    %v394 = vadd.f32 0.0, %v393
    %v395 = vpop.f32.mrb[0].mxu0
    %396 = vdwg.mxu0
    %v397 = vadd.f32 %v321, %v394
    %v398 = vxor.u32 %v397, 2147483648
    %v399 = vmul.f32 %v398, 1.442695
    %v400 = vpow.pop %v399
    %v401 = vadd.f32 %v400, 1.0
    %v402 = vrcp.pop %v401
    %v403 = vmul.f32 1.0, %v402
    %v404 = vmul.f32 %v403, 2.0
    %v405 = vsub.f32 %v404, 1.0
    %v406 = vmul.f32 %v403, %v301
    %408 = vrot.lane.b32.xlu0 %v405, 64
    %v409 = vpop.permute.xlu0 %408
    %v411 = vmul.f32 %v403, %v409
    %413 = vrot.lane.b32.xlu0 %v411, 32
    %v414 = vpop.permute.xlu0 %413
    %v416 = vadd.f32 %v406, %v414
    %v417 = vtanh.pop %v416
    %419 = vrot.lane.b32.xlu0 %v417, 64
    %v420 = vpop.permute.xlu0 %419
    %v422 = vmul.f32 %v403, %v420
    %s423 = sld [smem:[#allocation2 + $0x3]]
    %s424 = scalar_lea.vmem [#allocation6], %s423
    %v425 = vld [vmem:[%s424] sm:$0x1]
    %s426 = sld [smem:[#allocation2 + $0xb]]
    %s427 = scalar_lea.vmem [#allocation6], %s426
    %v428 = vld [vmem:[%s427] sm:$0x1]
    %v430 = vlaneseq
    %v431 = vshrl.u32 %v430, 7
    %v432 = vsub.s32 0, %v431
    %v433 = vrot.slane %v428, %v432
    %v435 = vsel %vm89, %v425, %v433
    %v436 = vsel %vm91, %v435, 0.0
    %438 = vrot.lane.b32.xlu0 %v422, 32
    %v439 = vpop.permute.xlu0 %438
    %v440 = vsel %vm93, %v439, 0
    %442 = vmatprep.subr.mxu0 0.0
    %443 = vmatpush1.msra.mxu0 %v73
    %444 = vmatprep.subr.mxu0 0.0
    %445 = vmatpush1.msra.mxu0 %v74
    %446 = vmatprep.subr.mxu0 0.0
    %447 = vmatpush1.msra.mxu0 %v75
    %448 = vmatprep.subr.mxu0 0.0
    %449 = vmatpush1.msra.mxu0 %v76
    %450 = vmatprep.subr.mxu0 0.0
    %451 = vmatpush1.msra.mxu0 0.0
    %452 = vmatprep.subr.mxu0 0.0
    %453 = vmatpush1.msra.mxu0 0.0
    %454 = vmatprep.subr.mxu0 0.0
    %455 = vmatpush1.msra.mxu0 0.0
    %456 = vmatprep.subr.mxu0 0.0
    %457 = vmatpush1.msra.mxu0 0.0
    %458 = vmatprep.subr.mxu0 0.0
    %459 = vmatpush1.msra.mxu0 0.0
    %460 = vmatprep.subr.mxu0 0.0
    %461 = vmatpush1.msra.mxu0 0.0
    %462 = vmatprep.subr.mxu0 0.0
    %463 = vmatpush1.msra.mxu0 0.0
    %464 = vmatprep.subr.mxu0 0.0
    %465 = vmatpush1.msra.mxu0 0.0
    %466 = vmatprep.subr.mxu0 0.0
    %467 = vmatpush1.msra.mxu0 0.0
    %468 = vmatprep.subr.mxu0 0.0
    %469 = vmatpush1.msra.mxu0 0.0
    %470 = vmatprep.subr.mxu0 0.0
    %471 = vmatpush1.msra.mxu0 0.0
    %472 = vmatprep.subr.mxu0 0.0
    %473 = vmatpush1.msra.mxu0 0.0
    %474 = vmatprep.subr.mxu0 0.0
    %475 = vmatpush1.msra.mxu0 0.0
    %476 = vmatprep.subr.mxu0 0.0
    %477 = vmatpush1.msra.mxu0 0.0
    %478 = vmatprep.subr.mxu0 0.0
    %479 = vmatpush1.msra.mxu0 0.0
    %480 = vmatprep.subr.mxu0 0.0
    %481 = vmatpush1.msra.mxu0 0.0
    %482 = vmatprep.subr.mxu0 0.0
    %483 = vmatpush1.msra.mxu0 0.0
    %484 = vmatprep.subr.mxu0 0.0
    %485 = vmatpush1.msra.mxu0 0.0
    %486 = vmatprep.subr.mxu0 0.0
    %487 = vmatpush1.msra.mxu0 0.0
    %488 = vmatprep.subr.mxu0 0.0
    %489 = vmatpush1.msra.mxu0 0.0
    %490 = vmatprep.subr.mxu0 0.0
    %491 = vmatpush1.msra.mxu0 0.0
    %492 = vmatprep.subr.mxu0 0.0
    %493 = vmatpush1.msra.mxu0 0.0
    %494 = vmatprep.subr.mxu0 0.0
    %495 = vmatpush1.msra.mxu0 0.0
    %496 = vmatprep.subr.mxu0 0.0
    %497 = vmatpush1.msra.mxu0 0.0
    %498 = vmatprep.subr.mxu0 0.0
    %499 = vmatpush1.msra.mxu0 0.0
    %500 = vmatprep.subr.mxu0 0.0
    %501 = vmatpush1.msra.mxu0 0.0
    %502 = vmatprep.subr.mxu0 0.0
    %503 = vmatpush1.msra.mxu0 0.0
    %504 = vmatprep.subr.mxu0 0.0
    %505 = vmatpush1.msra.mxu0 0.0
    %506 = vmatprep.mubr.f32.mxu0 0.0
    %507 = vmatmul.mubr.f32.gmra.mrb[0].mxu0 %v440
    %v508 = vpop.f32.mrb[0].mxu0
    %v509 = vadd.f32 0.0, %v508
    %v510 = vpop.f32.mrb[0].mxu0
    %511 = vdwg.mxu0
    %v512 = vadd.f32 %v436, %v509
    %v513 = vxor.u32 %v512, 2147483648
    %v514 = vmul.f32 %v513, 1.442695
    %v515 = vpow.pop %v514
    %v516 = vadd.f32 %v515, 1.0
    %v517 = vrcp.pop %v516
    %v518 = vmul.f32 1.0, %v517
    %v519 = vmul.f32 %v518, 2.0
    %v520 = vsub.f32 %v519, 1.0
    %v521 = vmul.f32 %v518, %v416
    %523 = vrot.lane.b32.xlu0 %v520, 64
    %v524 = vpop.permute.xlu0 %523
    %v526 = vmul.f32 %v518, %v524
    %528 = vrot.lane.b32.xlu0 %v526, 32
    %v529 = vpop.permute.xlu0 %528
    %v531 = vadd.f32 %v521, %v529
    %v532 = vtanh.pop %v531
    %534 = vrot.lane.b32.xlu0 %v532, 64
    %v535 = vpop.permute.xlu0 %534
    %v537 = vmul.f32 %v518, %v535
    %s538 = sld [smem:[#allocation2 + $0x4]]
    %s539 = scalar_lea.vmem [#allocation6], %s538
    %v540 = vld [vmem:[%s539] sm:$0x1]
    %s541 = sld [smem:[#allocation2 + $0xc]]
    %s542 = scalar_lea.vmem [#allocation6], %s541
    %v543 = vld [vmem:[%s542] sm:$0x1]
    %v545 = vlaneseq
    %v546 = vshrl.u32 %v545, 7
    %v547 = vsub.s32 0, %v546
    %v548 = vrot.slane %v543, %v547
    %v550 = vsel %vm89, %v540, %v548
    %v551 = vsel %vm91, %v550, 0.0
    %553 = vrot.lane.b32.xlu0 %v537, 32
    %v554 = vpop.permute.xlu0 %553
    %v555 = vsel %vm93, %v554, 0
    %557 = vmatprep.subr.mxu0 0.0
    %558 = vmatpush1.msra.mxu0 %v73
    %559 = vmatprep.subr.mxu0 0.0
    %560 = vmatpush1.msra.mxu0 %v74
    %561 = vmatprep.subr.mxu0 0.0
    %562 = vmatpush1.msra.mxu0 %v75
    %563 = vmatprep.subr.mxu0 0.0
    %564 = vmatpush1.msra.mxu0 %v76
    %565 = vmatprep.subr.mxu0 0.0
    %566 = vmatpush1.msra.mxu0 0.0
    %567 = vmatprep.subr.mxu0 0.0
    %568 = vmatpush1.msra.mxu0 0.0
    %569 = vmatprep.subr.mxu0 0.0
    %570 = vmatpush1.msra.mxu0 0.0
    %571 = vmatprep.subr.mxu0 0.0
    %572 = vmatpush1.msra.mxu0 0.0
    %573 = vmatprep.subr.mxu0 0.0
    %574 = vmatpush1.msra.mxu0 0.0
    %575 = vmatprep.subr.mxu0 0.0
    %576 = vmatpush1.msra.mxu0 0.0
    %577 = vmatprep.subr.mxu0 0.0
    %578 = vmatpush1.msra.mxu0 0.0
    %579 = vmatprep.subr.mxu0 0.0
    %580 = vmatpush1.msra.mxu0 0.0
    %581 = vmatprep.subr.mxu0 0.0
    %582 = vmatpush1.msra.mxu0 0.0
    %583 = vmatprep.subr.mxu0 0.0
    %584 = vmatpush1.msra.mxu0 0.0
    %585 = vmatprep.subr.mxu0 0.0
    %586 = vmatpush1.msra.mxu0 0.0
    %587 = vmatprep.subr.mxu0 0.0
    %588 = vmatpush1.msra.mxu0 0.0
    %589 = vmatprep.subr.mxu0 0.0
    %590 = vmatpush1.msra.mxu0 0.0
    %591 = vmatprep.subr.mxu0 0.0
    %592 = vmatpush1.msra.mxu0 0.0
    %593 = vmatprep.subr.mxu0 0.0
    %594 = vmatpush1.msra.mxu0 0.0
    %595 = vmatprep.subr.mxu0 0.0
    %596 = vmatpush1.msra.mxu0 0.0
    %597 = vmatprep.subr.mxu0 0.0
    %598 = vmatpush1.msra.mxu0 0.0
    %599 = vmatprep.subr.mxu0 0.0
    %600 = vmatpush1.msra.mxu0 0.0
    %601 = vmatprep.subr.mxu0 0.0
    %602 = vmatpush1.msra.mxu0 0.0
    %603 = vmatprep.subr.mxu0 0.0
    %604 = vmatpush1.msra.mxu0 0.0
    %605 = vmatprep.subr.mxu0 0.0
    %606 = vmatpush1.msra.mxu0 0.0
    %607 = vmatprep.subr.mxu0 0.0
    %608 = vmatpush1.msra.mxu0 0.0
    %609 = vmatprep.subr.mxu0 0.0
    %610 = vmatpush1.msra.mxu0 0.0
    %611 = vmatprep.subr.mxu0 0.0
    %612 = vmatpush1.msra.mxu0 0.0
    %613 = vmatprep.subr.mxu0 0.0
    %614 = vmatpush1.msra.mxu0 0.0
    %615 = vmatprep.subr.mxu0 0.0
    %616 = vmatpush1.msra.mxu0 0.0
    %617 = vmatprep.subr.mxu0 0.0
    %618 = vmatpush1.msra.mxu0 0.0
    %619 = vmatprep.subr.mxu0 0.0
    %620 = vmatpush1.msra.mxu0 0.0
    %621 = vmatprep.mubr.f32.mxu0 0.0
    %622 = vmatmul.mubr.f32.gmra.mrb[0].mxu0 %v555
    %v623 = vpop.f32.mrb[0].mxu0
    %v624 = vadd.f32 0.0, %v623
    %v625 = vpop.f32.mrb[0].mxu0
    %626 = vdwg.mxu0
    %v627 = vadd.f32 %v551, %v624
    %v628 = vxor.u32 %v627, 2147483648
    %v629 = vmul.f32 %v628, 1.442695
    %v630 = vpow.pop %v629
    %v631 = vadd.f32 %v630, 1.0
    %v632 = vrcp.pop %v631
    %v633 = vmul.f32 1.0, %v632
    %v634 = vmul.f32 %v633, 2.0
    %v635 = vsub.f32 %v634, 1.0
    %v636 = vmul.f32 %v633, %v531
    %638 = vrot.lane.b32.xlu0 %v635, 64
    %v639 = vpop.permute.xlu0 %638
    %v641 = vmul.f32 %v633, %v639
    %643 = vrot.lane.b32.xlu0 %v641, 32
    %v644 = vpop.permute.xlu0 %643
    %v646 = vadd.f32 %v636, %v644
    %v647 = vtanh.pop %v646
    %649 = vrot.lane.b32.xlu0 %v647, 64
    %v650 = vpop.permute.xlu0 %649
    %v652 = vmul.f32 %v633, %v650
    %s653 = sld [smem:[#allocation2 + $0x5]]
    %s654 = scalar_lea.vmem [#allocation6], %s653
    %v655 = vld [vmem:[%s654] sm:$0x1]
    %s656 = sld [smem:[#allocation2 + $0xd]]
    %s657 = scalar_lea.vmem [#allocation6], %s656
    %v658 = vld [vmem:[%s657] sm:$0x1]
    %v660 = vlaneseq
    %v661 = vshrl.u32 %v660, 7
    %v662 = vsub.s32 0, %v661
    %v663 = vrot.slane %v658, %v662
    %v665 = vsel %vm89, %v655, %v663
    %v666 = vsel %vm91, %v665, 0.0
    %668 = vrot.lane.b32.xlu0 %v652, 32
    %v669 = vpop.permute.xlu0 %668
    %v670 = vsel %vm93, %v669, 0
    %672 = vmatprep.subr.mxu0 0.0
    %673 = vmatpush1.msra.mxu0 %v73
    %674 = vmatprep.subr.mxu0 0.0
    %675 = vmatpush1.msra.mxu0 %v74
    %676 = vmatprep.subr.mxu0 0.0
    %677 = vmatpush1.msra.mxu0 %v75
    %678 = vmatprep.subr.mxu0 0.0
    %679 = vmatpush1.msra.mxu0 %v76
    %680 = vmatprep.subr.mxu0 0.0
    %681 = vmatpush1.msra.mxu0 0.0
    %682 = vmatprep.subr.mxu0 0.0
    %683 = vmatpush1.msra.mxu0 0.0
    %684 = vmatprep.subr.mxu0 0.0
    %685 = vmatpush1.msra.mxu0 0.0
    %686 = vmatprep.subr.mxu0 0.0
    %687 = vmatpush1.msra.mxu0 0.0
    %688 = vmatprep.subr.mxu0 0.0
    %689 = vmatpush1.msra.mxu0 0.0
    %690 = vmatprep.subr.mxu0 0.0
    %691 = vmatpush1.msra.mxu0 0.0
    %692 = vmatprep.subr.mxu0 0.0
    %693 = vmatpush1.msra.mxu0 0.0
    %694 = vmatprep.subr.mxu0 0.0
    %695 = vmatpush1.msra.mxu0 0.0
    %696 = vmatprep.subr.mxu0 0.0
    %697 = vmatpush1.msra.mxu0 0.0
    %698 = vmatprep.subr.mxu0 0.0
    %699 = vmatpush1.msra.mxu0 0.0
    %700 = vmatprep.subr.mxu0 0.0
    %701 = vmatpush1.msra.mxu0 0.0
    %702 = vmatprep.subr.mxu0 0.0
    %703 = vmatpush1.msra.mxu0 0.0
    %704 = vmatprep.subr.mxu0 0.0
    %705 = vmatpush1.msra.mxu0 0.0
    %706 = vmatprep.subr.mxu0 0.0
    %707 = vmatpush1.msra.mxu0 0.0
    %708 = vmatprep.subr.mxu0 0.0
    %709 = vmatpush1.msra.mxu0 0.0
    %710 = vmatprep.subr.mxu0 0.0
    %711 = vmatpush1.msra.mxu0 0.0
    %712 = vmatprep.subr.mxu0 0.0
    %713 = vmatpush1.msra.mxu0 0.0
    %714 = vmatprep.subr.mxu0 0.0
    %715 = vmatpush1.msra.mxu0 0.0
    %716 = vmatprep.subr.mxu0 0.0
    %717 = vmatpush1.msra.mxu0 0.0
    %718 = vmatprep.subr.mxu0 0.0
    %719 = vmatpush1.msra.mxu0 0.0
    %720 = vmatprep.subr.mxu0 0.0
    %721 = vmatpush1.msra.mxu0 0.0
    %722 = vmatprep.subr.mxu0 0.0
    %723 = vmatpush1.msra.mxu0 0.0
    %724 = vmatprep.subr.mxu0 0.0
    %725 = vmatpush1.msra.mxu0 0.0
    %726 = vmatprep.subr.mxu0 0.0
    %727 = vmatpush1.msra.mxu0 0.0
    %728 = vmatprep.subr.mxu0 0.0
    %729 = vmatpush1.msra.mxu0 0.0
    %730 = vmatprep.subr.mxu0 0.0
    %731 = vmatpush1.msra.mxu0 0.0
    %732 = vmatprep.subr.mxu0 0.0
    %733 = vmatpush1.msra.mxu0 0.0
    %734 = vmatprep.subr.mxu0 0.0
    %735 = vmatpush1.msra.mxu0 0.0
    %736 = vmatprep.mubr.f32.mxu0 0.0
    %737 = vmatmul.mubr.f32.gmra.mrb[0].mxu0 %v670
    %v738 = vpop.f32.mrb[0].mxu0
    %v739 = vadd.f32 0.0, %v738
    %v740 = vpop.f32.mrb[0].mxu0
    %741 = vdwg.mxu0
    %v742 = vadd.f32 %v666, %v739
    %v743 = vxor.u32 %v742, 2147483648
    %v744 = vmul.f32 %v743, 1.442695
    %v745 = vpow.pop %v744
    %v746 = vadd.f32 %v745, 1.0
    %v747 = vrcp.pop %v746
    %v748 = vmul.f32 1.0, %v747
    %v749 = vmul.f32 %v748, 2.0
    %v750 = vsub.f32 %v749, 1.0
    %v751 = vmul.f32 %v748, %v646
    %753 = vrot.lane.b32.xlu0 %v750, 64
    %v754 = vpop.permute.xlu0 %753
    %v756 = vmul.f32 %v748, %v754
    %758 = vrot.lane.b32.xlu0 %v756, 32
    %v759 = vpop.permute.xlu0 %758
    %v761 = vadd.f32 %v751, %v759
    %v762 = vtanh.pop %v761
    %764 = vrot.lane.b32.xlu0 %v762, 64
    %v765 = vpop.permute.xlu0 %764
    %v767 = vmul.f32 %v748, %v765
    %s768 = sld [smem:[#allocation2 + $0x6]]
    %s769 = scalar_lea.vmem [#allocation6], %s768
    %v770 = vld [vmem:[%s769] sm:$0x1]
    %s771 = sld [smem:[#allocation2 + $0xe]]
    %s772 = scalar_lea.vmem [#allocation6], %s771
    %v773 = vld [vmem:[%s772] sm:$0x1]
    %v775 = vlaneseq
    %v776 = vshrl.u32 %v775, 7
    %v777 = vsub.s32 0, %v776
    %v778 = vrot.slane %v773, %v777
    %v780 = vsel %vm89, %v770, %v778
    %v781 = vsel %vm91, %v780, 0.0
    %783 = vrot.lane.b32.xlu0 %v767, 32
    %v784 = vpop.permute.xlu0 %783
    %v785 = vsel %vm93, %v784, 0
    %787 = vmatprep.subr.mxu0 0.0
    %788 = vmatpush1.msra.mxu0 %v73
    %789 = vmatprep.subr.mxu0 0.0
    %790 = vmatpush1.msra.mxu0 %v74
    %791 = vmatprep.subr.mxu0 0.0
    %792 = vmatpush1.msra.mxu0 %v75
    %793 = vmatprep.subr.mxu0 0.0
    %794 = vmatpush1.msra.mxu0 %v76
    %795 = vmatprep.subr.mxu0 0.0
    %796 = vmatpush1.msra.mxu0 0.0
    %797 = vmatprep.subr.mxu0 0.0
    %798 = vmatpush1.msra.mxu0 0.0
    %799 = vmatprep.subr.mxu0 0.0
    %800 = vmatpush1.msra.mxu0 0.0
    %801 = vmatprep.subr.mxu0 0.0
    %802 = vmatpush1.msra.mxu0 0.0
    %803 = vmatprep.subr.mxu0 0.0
    %804 = vmatpush1.msra.mxu0 0.0
    %805 = vmatprep.subr.mxu0 0.0
    %806 = vmatpush1.msra.mxu0 0.0
    %807 = vmatprep.subr.mxu0 0.0
    %808 = vmatpush1.msra.mxu0 0.0
    %809 = vmatprep.subr.mxu0 0.0
    %810 = vmatpush1.msra.mxu0 0.0
    %811 = vmatprep.subr.mxu0 0.0
    %812 = vmatpush1.msra.mxu0 0.0
    %813 = vmatprep.subr.mxu0 0.0
    %814 = vmatpush1.msra.mxu0 0.0
    %815 = vmatprep.subr.mxu0 0.0
    %816 = vmatpush1.msra.mxu0 0.0
    %817 = vmatprep.subr.mxu0 0.0
    %818 = vmatpush1.msra.mxu0 0.0
    %819 = vmatprep.subr.mxu0 0.0
    %820 = vmatpush1.msra.mxu0 0.0
    %821 = vmatprep.subr.mxu0 0.0
    %822 = vmatpush1.msra.mxu0 0.0
    %823 = vmatprep.subr.mxu0 0.0
    %824 = vmatpush1.msra.mxu0 0.0
    %825 = vmatprep.subr.mxu0 0.0
    %826 = vmatpush1.msra.mxu0 0.0
    %827 = vmatprep.subr.mxu0 0.0
    %828 = vmatpush1.msra.mxu0 0.0
    %829 = vmatprep.subr.mxu0 0.0
    %830 = vmatpush1.msra.mxu0 0.0
    %831 = vmatprep.subr.mxu0 0.0
    %832 = vmatpush1.msra.mxu0 0.0
    %833 = vmatprep.subr.mxu0 0.0
    %834 = vmatpush1.msra.mxu0 0.0
    %835 = vmatprep.subr.mxu0 0.0
    %836 = vmatpush1.msra.mxu0 0.0
    %837 = vmatprep.subr.mxu0 0.0
    %838 = vmatpush1.msra.mxu0 0.0
    %839 = vmatprep.subr.mxu0 0.0
    %840 = vmatpush1.msra.mxu0 0.0
    %841 = vmatprep.subr.mxu0 0.0
    %842 = vmatpush1.msra.mxu0 0.0
    %843 = vmatprep.subr.mxu0 0.0
    %844 = vmatpush1.msra.mxu0 0.0
    %845 = vmatprep.subr.mxu0 0.0
    %846 = vmatpush1.msra.mxu0 0.0
    %847 = vmatprep.subr.mxu0 0.0
    %848 = vmatpush1.msra.mxu0 0.0
    %849 = vmatprep.subr.mxu0 0.0
    %850 = vmatpush1.msra.mxu0 0.0
    %851 = vmatprep.mubr.f32.mxu0 0.0
    %852 = vmatmul.mubr.f32.gmra.mrb[0].mxu0 %v785
    %v853 = vpop.f32.mrb[0].mxu0
    %v854 = vadd.f32 0.0, %v853
    %v855 = vpop.f32.mrb[0].mxu0
    %856 = vdwg.mxu0
    %v857 = vadd.f32 %v781, %v854
    %v858 = vxor.u32 %v857, 2147483648
    %v859 = vmul.f32 %v858, 1.442695
    %v860 = vpow.pop %v859
    %v861 = vadd.f32 %v860, 1.0
    %v862 = vrcp.pop %v861
    %v863 = vmul.f32 1.0, %v862
    %v864 = vmul.f32 %v863, 2.0
    %v865 = vsub.f32 %v864, 1.0
    %v866 = vmul.f32 %v863, %v761
    %868 = vrot.lane.b32.xlu0 %v865, 64
    %v869 = vpop.permute.xlu0 %868
    %v871 = vmul.f32 %v863, %v869
    %873 = vrot.lane.b32.xlu0 %v871, 32
    %v874 = vpop.permute.xlu0 %873
    %v876 = vadd.f32 %v866, %v874
    %v877 = vtanh.pop %v876
    %879 = vrot.lane.b32.xlu0 %v877, 64
    %v880 = vpop.permute.xlu0 %879
    %v882 = vmul.f32 %v863, %v880
    %s883 = sld [smem:[#allocation2 + $0x7]]
    %s884 = scalar_lea.vmem [#allocation6], %s883
    %v885 = vld [vmem:[%s884] sm:$0x1]
    %s886 = sld [smem:[#allocation2 + $0xf]]
    %s887 = scalar_lea.vmem [#allocation6], %s886
    %v888 = vld [vmem:[%s887] sm:$0x1]
    %v890 = vlaneseq
    %v891 = vshrl.u32 %v890, 7
    %v892 = vsub.s32 0, %v891
    %v893 = vrot.slane %v888, %v892
    %v895 = vsel %vm89, %v885, %v893
    %v896 = vsel %vm91, %v895, 0.0
    %898 = vrot.lane.b32.xlu0 %v882, 32
    %v899 = vpop.permute.xlu0 %898
    %v900 = vsel %vm93, %v899, 0
    %902 = vmatprep.subr.mxu0 0.0
    %903 = vmatpush1.msra.mxu0 %v73
    %904 = vmatprep.subr.mxu0 0.0
    %905 = vmatpush1.msra.mxu0 %v74
    %906 = vmatprep.subr.mxu0 0.0
    %907 = vmatpush1.msra.mxu0 %v75
    %908 = vmatprep.subr.mxu0 0.0
    %909 = vmatpush1.msra.mxu0 %v76
    %910 = vmatprep.subr.mxu0 0.0
    %911 = vmatpush1.msra.mxu0 0.0
    %912 = vmatprep.subr.mxu0 0.0
    %913 = vmatpush1.msra.mxu0 0.0
    %914 = vmatprep.subr.mxu0 0.0
    %915 = vmatpush1.msra.mxu0 0.0
    %916 = vmatprep.subr.mxu0 0.0
    %917 = vmatpush1.msra.mxu0 0.0
    %918 = vmatprep.subr.mxu0 0.0
    %919 = vmatpush1.msra.mxu0 0.0
    %920 = vmatprep.subr.mxu0 0.0
    %921 = vmatpush1.msra.mxu0 0.0
    %922 = vmatprep.subr.mxu0 0.0
    %923 = vmatpush1.msra.mxu0 0.0
    %924 = vmatprep.subr.mxu0 0.0
    %925 = vmatpush1.msra.mxu0 0.0
    %926 = vmatprep.subr.mxu0 0.0
    %927 = vmatpush1.msra.mxu0 0.0
    %928 = vmatprep.subr.mxu0 0.0
    %929 = vmatpush1.msra.mxu0 0.0
    %930 = vmatprep.subr.mxu0 0.0
    %931 = vmatpush1.msra.mxu0 0.0
    %932 = vmatprep.subr.mxu0 0.0
    %933 = vmatpush1.msra.mxu0 0.0
    %934 = vmatprep.subr.mxu0 0.0
    %935 = vmatpush1.msra.mxu0 0.0
    %936 = vmatprep.subr.mxu0 0.0
    %937 = vmatpush1.msra.mxu0 0.0
    %938 = vmatprep.subr.mxu0 0.0
    %939 = vmatpush1.msra.mxu0 0.0
    %940 = vmatprep.subr.mxu0 0.0
    %941 = vmatpush1.msra.mxu0 0.0
    %942 = vmatprep.subr.mxu0 0.0
    %943 = vmatpush1.msra.mxu0 0.0
    %944 = vmatprep.subr.mxu0 0.0
    %945 = vmatpush1.msra.mxu0 0.0
    %946 = vmatprep.subr.mxu0 0.0
    %947 = vmatpush1.msra.mxu0 0.0
    %948 = vmatprep.subr.mxu0 0.0
    %949 = vmatpush1.msra.mxu0 0.0
    %950 = vmatprep.subr.mxu0 0.0
    %951 = vmatpush1.msra.mxu0 0.0
    %952 = vmatprep.subr.mxu0 0.0
    %953 = vmatpush1.msra.mxu0 0.0
    %954 = vmatprep.subr.mxu0 0.0
    %955 = vmatpush1.msra.mxu0 0.0
    %956 = vmatprep.subr.mxu0 0.0
    %957 = vmatpush1.msra.mxu0 0.0
    %958 = vmatprep.subr.mxu0 0.0
    %959 = vmatpush1.msra.mxu0 0.0
    %960 = vmatprep.subr.mxu0 0.0
    %961 = vmatpush1.msra.mxu0 0.0
    %962 = vmatprep.subr.mxu0 0.0
    %963 = vmatpush1.msra.mxu0 0.0
    %964 = vmatprep.subr.mxu0 0.0
    %965 = vmatpush1.msra.mxu0 0.0
    %966 = vmatprep.mubr.f32.mxu0 0.0
    %967 = vmatmul.mubr.f32.gmra.mrb[0].mxu0 %v900
    %v968 = vpop.f32.mrb[0].mxu0
    %v969 = vadd.f32 0.0, %v968
    %v970 = vpop.f32.mrb[0].mxu0
    %971 = vdwg.mxu0
    %v972 = vadd.f32 %v896, %v969
    %v973 = vxor.u32 %v972, 2147483648
    %v974 = vmul.f32 %v973, 1.442695
    %v975 = vpow.pop %v974
    %v976 = vadd.f32 %v975, 1.0
    %v977 = vrcp.pop %v976
    %v978 = vmul.f32 1.0, %v977
    %v979 = vmul.f32 %v978, 2.0
    %v980 = vsub.f32 %v979, 1.0
    %v981 = vmul.f32 %v978, %v876
    %983 = vrot.lane.b32.xlu0 %v980, 64
    %v984 = vpop.permute.xlu0 %983
    %v986 = vmul.f32 %v978, %v984
    %988 = vrot.lane.b32.xlu0 %v986, 32
    %v989 = vpop.permute.xlu0 %988
    %v991 = vadd.f32 %v981, %v989
    %v992 = vtanh.pop %v991
    %994 = vrot.lane.b32.xlu0 %v992, 64
    %v995 = vpop.permute.xlu0 %994
    %v997 = vmul.f32 %v978, %v995
    %v998 = vld [vmem:[#allocation9] sm:$0xff]
    %v999 = vld [vmem:[#allocation9 + $0x8] sm:$0xff]
    %v1000 = vld [vmem:[#allocation9 + $0x10] sm:$0xff]
    %v1001 = vld [vmem:[#allocation9 + $0x18] sm:$0xff]
    %v1002 = vld [vmem:[%s4] sm:$0x1]
    %v1004 = vlaneseq
    %v1005 = vshrl.u32 %v1004, 7
    %v1006 = vsub.s32 0, %v1005
    %v1007 = vrot.slane %v1002, %v1006
    %1010 = vrot.lane.b32.xlu0 %v997, 32
    %v1011 = vpop.permute.xlu0 %1010
    %v1012 = vsel %vm93, %v1011, 0
    %1014 = vmatprep.subr.mxu0 0.0
    %1015 = vmatpush1.msra.mxu0 %v998
    %1016 = vmatprep.subr.mxu0 0.0
    %1017 = vmatpush1.msra.mxu0 %v999
    %1018 = vmatprep.subr.mxu0 0.0
    %1019 = vmatpush1.msra.mxu0 %v1000
    %1020 = vmatprep.subr.mxu0 0.0
    %1021 = vmatpush1.msra.mxu0 %v1001
    %1022 = vmatprep.subr.mxu0 0.0
    %1023 = vmatpush1.msra.mxu0 0.0
    %1024 = vmatprep.subr.mxu0 0.0
    %1025 = vmatpush1.msra.mxu0 0.0
    %1026 = vmatprep.subr.mxu0 0.0
    %1027 = vmatpush1.msra.mxu0 0.0
    %1028 = vmatprep.subr.mxu0 0.0
    %1029 = vmatpush1.msra.mxu0 0.0
    %1030 = vmatprep.subr.mxu0 0.0
    %1031 = vmatpush1.msra.mxu0 0.0
    %1032 = vmatprep.subr.mxu0 0.0
    %1033 = vmatpush1.msra.mxu0 0.0
    %1034 = vmatprep.subr.mxu0 0.0
    %1035 = vmatpush1.msra.mxu0 0.0
    %1036 = vmatprep.subr.mxu0 0.0
    %1037 = vmatpush1.msra.mxu0 0.0
    %1038 = vmatprep.subr.mxu0 0.0
    %1039 = vmatpush1.msra.mxu0 0.0
    %1040 = vmatprep.subr.mxu0 0.0
    %1041 = vmatpush1.msra.mxu0 0.0
    %1042 = vmatprep.subr.mxu0 0.0
    %1043 = vmatpush1.msra.mxu0 0.0
    %1044 = vmatprep.subr.mxu0 0.0
    %1045 = vmatpush1.msra.mxu0 0.0
    %1046 = vmatprep.subr.mxu0 0.0
    %1047 = vmatpush1.msra.mxu0 0.0
    %1048 = vmatprep.subr.mxu0 0.0
    %1049 = vmatpush1.msra.mxu0 0.0
    %1050 = vmatprep.subr.mxu0 0.0
    %1051 = vmatpush1.msra.mxu0 0.0
    %1052 = vmatprep.subr.mxu0 0.0
    %1053 = vmatpush1.msra.mxu0 0.0
    %1054 = vmatprep.subr.mxu0 0.0
    %1055 = vmatpush1.msra.mxu0 0.0
    %1056 = vmatprep.subr.mxu0 0.0
    %1057 = vmatpush1.msra.mxu0 0.0
    %1058 = vmatprep.subr.mxu0 0.0
    %1059 = vmatpush1.msra.mxu0 0.0
    %1060 = vmatprep.subr.mxu0 0.0
    %1061 = vmatpush1.msra.mxu0 0.0
    %1062 = vmatprep.subr.mxu0 0.0
    %1063 = vmatpush1.msra.mxu0 0.0
    %1064 = vmatprep.subr.mxu0 0.0
    %1065 = vmatpush1.msra.mxu0 0.0
    %1066 = vmatprep.subr.mxu0 0.0
    %1067 = vmatpush1.msra.mxu0 0.0
    %1068 = vmatprep.subr.mxu0 0.0
    %1069 = vmatpush1.msra.mxu0 0.0
    %1070 = vmatprep.subr.mxu0 0.0
    %1071 = vmatpush1.msra.mxu0 0.0
    %1072 = vmatprep.subr.mxu0 0.0
    %1073 = vmatpush1.msra.mxu0 0.0
    %1074 = vmatprep.subr.mxu0 0.0
    %1075 = vmatpush1.msra.mxu0 0.0
    %1076 = vmatprep.subr.mxu0 0.0
    %1077 = vmatpush1.msra.mxu0 0.0
    %1078 = vmatprep.mubr.f32.mxu0 0.0
    %1079 = vmatmul.mubr.f32.gmra.mrb[0].mxu0 %v1012
    %v1080 = vpop.f32.mrb[0].mxu0
    %v1081 = vadd.f32 %v1007, %v1080
    %v1082 = vpop.f32.mrb[0].mxu0
    %1083 = vdwg.mxu0
    %1084 = vst [vmem:[#allocation10] sm:$0xff] %v1081
    // Predicated region
    $region38: #{tpu_custom_call.1} parent=1 // pred_check
      _
    $region39: #{tpu_custom_call.1} parent=1 // pred_check_branch
      %1086 = sbr.rel (0) target = $region41
    $region40: #{tpu_custom_call.1} parent=1 // pred_region
      %s1088 = ssub.s32 128, 128
      %1089 = vsyncadd [#allocation4], %s1088
      %s1091 = sshll.u32 [#allocation10], 4
      %s1092 = int_to_ptr.vmem [resolvable:$true] %s1091
      %1094 = dma.vmem_to_hbm [thread:$0]  %s1092, 128, %s5, [#allocation4]
    $region41: #{tpu_custom_call.1} parent=1 // pred_fallthru
      _
    // Predicated region
    $region42: #{tpu_custom_call.1} parent=1 // pred_check
      _
    $region43: #{tpu_custom_call.1} parent=1 // pred_check_branch
      %1096 = sbr.rel (0) target = $region45
    $region44: #{tpu_custom_call.1} parent=1 // pred_region
      %1097 = dma.done [#allocation4], 128
    $region45: #{tpu_custom_call.1} parent=1 // pred_fallthru
      _
    %1098 = vsyncpa [#allocation3], 1
    %1099 = vsyncpa [#allocation8], 1
    %1100 = vsyncpa [#allocation4], 1
    %1101 = vsyncpa [#allocation5], 1

</llo_original>
